<compile_context>
chip_gen: v5e
topology: v5e:2x2
jax: 0.10.0
libtpu: 0.0.40
codegen_flags: <defaults>
</compile_context>

<pallas_src>
import functools

import jax
import jax.numpy as jnp
from jax import lax
from jax.experimental import pallas as pl
from jax.experimental.pallas import tpu as pltpu

# Fixed Sobel weights (what the PyTorch module writes into conv_horizontal /
# conv_vertical).  Used only by the pure-JAX reference; the kernel uses the
# separable form ([1,2,1] x [-1,0,1] and [-1,0,1] x [1,2,1]).
_K_H = ((-1.0, 0.0, 1.0),
        (-2.0, 0.0, 2.0),
        (-1.0, 0.0, 1.0))
_K_V = ((-1.0, -2.0, -1.0),
        ( 0.0,  0.0,  0.0),
        ( 1.0,  2.0,  1.0))

_MIB = 1024 * 1024
_FOLD_TARGET_BYTES = 2 * _MIB     # fold small batch elements up to ~2 MiB/step
_MAX_BATCH_FOLD = 16


def _gray(block, c_used):
    """block: (c_used, R, W) native dtype -> (R, W) float32 grayscale."""
    if c_used == 3:
        return (0.299 * block[0].astype(jnp.float32)
                + 0.587 * block[1].astype(jnp.float32)
                + 0.114 * block[2].astype(jnp.float32))
    return block[0].astype(jnp.float32)


def _sobel_core(gm, up, down, w):
    """Separable Sobel magnitude for one row tile.

    gm/up/down: (R, W) f32; `up`/`down` are the row-above / row-below images
    with the image borders already resolved (zeros outside the image).
    """
    s = up + gm + gm + down            # [1, 2, 1] column pass
    d = down - up                      # [-1, 0, 1] column pass

    # Horizontal pass: unmasked XLU lane rotations, then fix columns 0 / W-1.
    s_l = pltpu.roll(s, shift=1, axis=1)        # s[:, j-1] (wraps at j == 0)
    s_r = pltpu.roll(s, shift=w - 1, axis=1)    # s[:, j+1] (wraps at j == W-1)
    d_l = pltpu.roll(d, shift=1, axis=1)
    d_r = pltpu.roll(d, shift=w - 1, axis=1)

    col = lax.broadcasted_iota(jnp.int32, gm.shape, 1)
    first = col == 0
    last = col == w - 1
    gh = jnp.where(last, 0.0, s_r) - jnp.where(first, 0.0, s_l)   # [-1,0,1] row
    gv = jnp.where(first, 0.0, d_l) + d + d + jnp.where(last, 0.0, d_r)
    return jnp.sqrt(gh * gh + gv * gv)


def _sobel_kernel_whole(x_ref, o_ref, *, c_used, bt, h, w):
    """Whole-image path: `bt` small batch elements per grid step (no halos)."""
    rloc = lax.broadcasted_iota(jnp.int32, (h, 1), 0)
    top = rloc == 0
    bot = rloc == h - 1
    for i in range(bt):                       # static unroll; bt is tiny
        g = _gray(x_ref[i], c_used)           # (H, W) f32
        up = jnp.where(top, 0.0, pltpu.roll(g, shift=1, axis=0))
        down = jnp.where(bot, 0.0, pltpu.roll(g, shift=h - 1, axis=0))
        o_ref[i, 0] = _sobel_core(g, up, down, w)


def _sobel_kernel_tiled(x_ref, top_ref, bot_ref, o_ref, *,
                        c_used, tile_h, h_total, w):
    """Row-tiled path with 8-row halo blocks above / below each tile.

    Handles a partial last tile (H % tile_h != 0): rows past H-1 are garbage
    but their output is discarded by the masked boundary write, and jnp.where
    (select, not multiply) keeps that garbage out of valid rows.
    """
    t = pl.program_id(1)
    gm = _gray(x_ref[0], c_used)                       # (tile_h, W) f32
    gt = _gray(top_ref[0], c_used)[7:8]                # row above the tile
    gb = _gray(bot_ref[0], c_used)[0:1]                # row below the tile

    rloc = lax.broadcasted_iota(jnp.int32, (tile_h, 1), 0)
    rglob = rloc + t * tile_h

    up = pltpu.roll(gm, shift=1, axis=0)
    up = jnp.where(rloc == 0, gt, up)                  # halo row
    up = jnp.where(rglob == 0, 0.0, up)                # top image border
    down = pltpu.roll(gm, shift=tile_h - 1, axis=0)
    down = jnp.where(rloc == tile_h - 1, gb, down)     # halo row
    down = jnp.where(rglob == h_total - 1, 0.0, down)  # bottom image border

    o_ref[0, 0] = _sobel_core(gm, up, down, w)


def _auto_tile_rows(h, bytes_fn, budget):
    """Largest multiple-of-8 row count whose per-step footprint fits `budget`.

    Prefers a divisor of H (no partial last tile) when a reasonably large one
    exists; otherwise the grid uses cdiv + a masked partial last tile.
    """
    max_rows = 8
    while max_rows + 8 < h and bytes_fn(max_rows + 8) <= budget:
        max_rows += 8
    best_div = None
    for cand in range(8, max_rows + 1, 8):
        if h % cand == 0:
            best_div = cand
    if best_div is not None and best_div * 2 >= max_rows:
        return best_div
    return max_rows


def sobel_filter(x, *, tile_h=None):
    """x: (B, C, H, W) any float dtype.  Returns (B, 1, H, W) float32."""
    B, C, H, W = x.shape
    if C == 2:
        # The PyTorch reference statically indexes channels 0..2 when C > 1.
        raise ValueError("SobelFilter needs C == 1 or C >= 3 channels.")
    c_used = 3 if C >= 3 else 1
    in_bytes = jnp.dtype(x.dtype).itemsize
    f32 = 4

    # ------------------------------------------------------------------ VMEM
    try:
        vmem_cap = int(getattr(pltpu.get_tpu_info(), "vmem_capacity_bytes",
                               64 * _MIB))
    except Exception:  # pragma: no cover - conservative default (v7x-sized)
        vmem_cap = 64 * _MIB
    vmem_cap = max(vmem_cap, 32 * _MIB)
    tile_budget = max(8 * _MIB, vmem_cap // 4)        # 16 MiB v7x, 32 MiB v5e/v6e
    vmem_cap_hdrm = max(vmem_cap - 8 * _MIB, 24 * _MIB)

    def step_bytes(rows, bt=1, halos=False):
        inp = bt * c_used * rows * W * in_bytes
        halo = 2 * c_used * 8 * W * in_bytes if halos else 0
        out = bt * rows * W * f32
        tmp = 10 * bt * rows * W * f32                 # in-kernel f32 temporaries
        return 2 * (inp + halo + out) + tmp            # in/out double-buffered

    # -------------------------------------------------------------- tile rows
    if tile_h is None:
        whole_fits = step_bytes(H) <= tile_budget
        # v7x has 2 TensorCores: make sure a single big image still yields
        # >= 2 parallel grid steps.
        force_split = (whole_fits and B == 1 and H % 16 == 0
                       and c_used * H * W * in_bytes >= _MIB)
        if whole_fits and not force_split:
            tile_rows = H
        elif force_split:
            tile_rows = H // 2
        else:
            tile_rows = _auto_tile_rows(
                H, lambda r: step_bytes(r, halos=True), tile_budget)
    else:
        tile_rows = min(int(tile_h), H)
        if tile_rows != H and tile_rows % 8 != 0:
            raise ValueError("tile_h must be a multiple of 8 (or >= H).")

    # --------------------------------------------------------------- dispatch
    if tile_rows >= H:
        # Whole-image path, optionally folding several small batch elements
        # into one grid step (keep >= 2 grid steps when B >= 2 for megacore).
        bt = 1
        if B > 1:
            per = c_used * H * W * in_bytes + H * W * f32
            for cand in range(2, min(B, _MAX_BATCH_FOLD) + 1):
                if B % cand:
                    continue
                if B // cand < 2:
                    break
                if cand * per > _FOLD_TARGET_BYTES:
                    break
                if step_bytes(H, bt=cand) > tile_budget:
                    break
                bt = cand
        grid = (B // bt,)
        kernel = functools.partial(_sobel_kernel_whole,
                                   c_used=c_used, bt=bt, h=H, w=W)
        in_specs = [
            # Only DMA the channels the grayscale mix reads, native dtype.
            pl.BlockSpec((bt, c_used, H, W), lambda b: (b, 0, 0, 0)),
        ]
        out_spec = pl.BlockSpec((bt, 1, H, W), lambda b: (b, 0, 0, 0))
        operands = (x,)
        est = step_bytes(H, bt=bt)
        dims = ("parallel",)
    else:
        n_tiles = pl.cdiv(H, tile_rows)
        thb = tile_rows // 8                 # tile height in 8-row halo blocks
        hb_last = pl.cdiv(H, 8) - 1          # last valid 8-row block index
        kernel = functools.partial(_sobel_kernel_tiled, c_used=c_used,
                                   tile_h=tile_rows, h_total=H, w=W)
        in_specs = [
            pl.BlockSpec((1, c_used, tile_rows, W), lambda b, t: (b, 0, t, 0)),
            # 8-row block just above the tile (clamped at the top border).
            pl.BlockSpec((1, c_used, 8, W),
                         lambda b, t: (b, 0, jnp.maximum(t * thb - 1, 0), 0)),
            # 8-row block just below the tile (clamped at the bottom border).
            pl.BlockSpec((1, c_used, 8, W),
                         lambda b, t: (b, 0, jnp.minimum((t + 1) * thb, hb_last), 0)),
        ]
        out_spec = pl.BlockSpec((1, 1, tile_rows, W), lambda b, t: (b, 0, t, 0))
        operands = (x, x, x)
        grid = (B, n_tiles)
        est = step_bytes(tile_rows, halos=True)
        dims = ("parallel", "parallel")

    vmem_limit = int(min(max(2 * est, 32 * _MIB), vmem_cap_hdrm))

    return pl.pallas_call(
        kernel,
        out_shape=jax.ShapeDtypeStruct((B, 1, H, W), jnp.float32),
        grid_spec=pltpu.PrefetchScalarGridSpec(
            num_scalar_prefetch=0,
            grid=grid,
            in_specs=in_specs,
            out_specs=out_spec,
        ),
        compiler_params=pltpu.CompilerParams(
            dimension_semantics=dims,
            vmem_limit_bytes=vmem_limit,
        ),
    )(*operands)


def _sobel_reference(x):
    """Pure-JAX reference mirroring the PyTorch forward."""
    B, C, H, W = x.shape
    x = x.astype(jnp.float32)
    if C > 1:
        gray = 0.299 * x[:, 0] + 0.587 * x[:, 1] + 0.114 * x[:, 2]
        gray = gray[:, None]
    else:
        gray = x
    kh = jnp.asarray(_K_H, jnp.float32)[None, None]
    kv = jnp.asarray(_K_V, jnp.float32)[None, None]
    gh = lax.conv_general_dilated(gray, kh, (1, 1), "SAME")
    gv = lax.conv_general_dilated(gray, kv, (1, 1), "SAME")
    return jnp.sqrt(gh * gh + gv * gv)


if __name__ == "__main__":
    key = jax.random.PRNGKey(0)

    # Main shape implied by the module usage.
    x = jax.random.normal(key, (2, 4, 16, 16), dtype=jnp.float32)
    out = jax.block_until_ready(sobel_filter(x))
    ref = jax.block_until_ready(_sobel_reference(x))
    assert out.shape == (2, 1, 16, 16)
    assert jnp.allclose(out, ref, atol=1e-5, rtol=1e-5), "mismatch (f32 whole)"

    # Native bf16 input: block is DMA'd as bf16, cast to f32 inside the kernel.
    x_bf16 = x.astype(jnp.bfloat16)
    out_bf = jax.block_until_ready(sobel_filter(x_bf16))
    ref_bf = _sobel_reference(x_bf16.astype(jnp.float32))
    assert jnp.allclose(out_bf, ref_bf, atol=1e-4, rtol=1e-4), "mismatch (bf16)"

    # Batch-folded whole-image path (bt > 1).
    x4 = jax.random.normal(jax.random.PRNGKey(0), (4, 3, 16, 16), jnp.float32)
    out4 = jax.block_until_ready(sobel_filter(x4))
    assert jnp.allclose(out4, _sobel_reference(x4), atol=1e-5, rtol=1e-5), \
        "mismatch (batch fold)"

    # Row-tiled path with halo blocks (forced small tile).
    x2 = jax.random.normal(jax.random.PRNGKey(0), (1, 3, 64, 128), jnp.float32)
    out2 = jax.block_until_ready(sobel_filter(x2, tile_h=16))
    assert jnp.allclose(out2, _sobel_reference(x2), atol=1e-4, rtol=1e-4), \
        "mismatch (tiled)"

    # Partial last tile (H not a multiple of tile_h).
    x3 = jax.random.normal(jax.random.PRNGKey(0), (1, 1, 40, 128), jnp.float32)
    out3 = jax.block_until_ready(sobel_filter(x3, tile_h=16))
    assert jnp.allclose(out3, _sobel_reference(x3), atol=1e-4, rtol=1e-4), \
        "mismatch (partial tile)"

    print("KERNEL_OK")
</pallas_src>

<mosaic_0001>
module attributes {stable_mosaic.version = 11 : i64} {
  func.func @_sobel_kernel_whole(%arg0: i32, %arg1: memref<1x3x16x16xf32, #tpu.memory_space<vmem>>, %arg2: memref<1x1x16x16xf32, #tpu.memory_space<vmem>>) attributes {dimension_semantics = [#tpu.dimension_semantics<parallel>], iteration_bounds = array<i64: 2>, scalar_prefetch = 0 : i64, scratch_operands = 0 : i64, tpu.core_type = #tpu.core_type<tc>, window_params = [{transform_indices = @transform_0, window_bounds = array<i64: 1, 3, 16, 16>}, {transform_indices = @transform_1, window_bounds = array<i64: 1, 1, 16, 16>}]} {
    %0 = tpu.iota {dimensions = array<i32: 0>} : vector<16x1xi32>
    %c0_i32 = arith.constant 0 : i32
    %1 = vector.broadcast %c0_i32 : i32 to vector<16x1xi32>
    %2 = arith.cmpi eq, %0, %1 : vector<16x1xi32>
    %c15_i32 = arith.constant 15 : i32
    %3 = vector.broadcast %c15_i32 : i32 to vector<16x1xi32>
    %4 = arith.cmpi eq, %0, %3 : vector<16x1xi32>
    %c0 = arith.constant 0 : index
    %c0_0 = arith.constant 0 : index
    %c0_1 = arith.constant 0 : index
    %c0_2 = arith.constant 0 : index
    %5 = vector.load %arg1[%c0, %c0_0, %c0_1, %c0_2] : memref<1x3x16x16xf32, #tpu.memory_space<vmem>>, vector<1x3x16x16xf32>
    %6 = vector.shape_cast %5 : vector<1x3x16x16xf32> to vector<3x16x16xf32>
    %7 = vector.extract_strided_slice %6 {offsets = [0, 0, 0], sizes = [1, 16, 16], strides = [1, 1, 1]} : vector<3x16x16xf32> to vector<1x16x16xf32>
    %8 = vector.shape_cast %7 : vector<1x16x16xf32> to vector<16x16xf32>
    %cst = arith.constant 2.990000e-01 : f32
    %9 = vector.broadcast %cst : f32 to vector<16x16xf32>
    %10 = arith.mulf %9, %8 : vector<16x16xf32>
    %11 = vector.extract_strided_slice %6 {offsets = [1, 0, 0], sizes = [1, 16, 16], strides = [1, 1, 1]} : vector<3x16x16xf32> to vector<1x16x16xf32>
    %12 = vector.shape_cast %11 : vector<1x16x16xf32> to vector<16x16xf32>
    %cst_3 = arith.constant 5.870000e-01 : f32
    %13 = vector.broadcast %cst_3 : f32 to vector<16x16xf32>
    %14 = arith.mulf %13, %12 : vector<16x16xf32>
    %15 = arith.addf %10, %14 : vector<16x16xf32>
    %16 = vector.extract_strided_slice %6 {offsets = [2, 0, 0], sizes = [1, 16, 16], strides = [1, 1, 1]} : vector<3x16x16xf32> to vector<1x16x16xf32>
    %17 = vector.shape_cast %16 : vector<1x16x16xf32> to vector<16x16xf32>
    %cst_4 = arith.constant 1.140000e-01 : f32
    %18 = vector.broadcast %cst_4 : f32 to vector<16x16xf32>
    %19 = arith.mulf %18, %17 : vector<16x16xf32>
    %20 = arith.addf %15, %19 : vector<16x16xf32>
    %c1_i32 = arith.constant 1 : i32
    %21 = tpu.dynamic_rotate %20 by %c1_i32 dim 0 : vector<16x16xf32>, i32 -> vector<16x16xf32>
    %cst_5 = arith.constant 0.000000e+00 : f32
    %22 = vector.shape_cast %2 : vector<16x1xi1> to vector<16x1xi1>
    %23 = vector.broadcast %22 : vector<16x1xi1> to vector<16x16xi1>
    %24 = vector.broadcast %cst_5 : f32 to vector<16x16xf32>
    %25 = arith.select %23, %24, %21 : vector<16x16xi1>, vector<16x16xf32>
    %c15_i32_6 = arith.constant 15 : i32
    %26 = tpu.dynamic_rotate %20 by %c15_i32_6 dim 0 : vector<16x16xf32>, i32 -> vector<16x16xf32>
    %cst_7 = arith.constant 0.000000e+00 : f32
    %27 = vector.shape_cast %4 : vector<16x1xi1> to vector<16x1xi1>
    %28 = vector.broadcast %27 : vector<16x1xi1> to vector<16x16xi1>
    %29 = vector.broadcast %cst_7 : f32 to vector<16x16xf32>
    %30 = arith.select %28, %29, %26 : vector<16x16xi1>, vector<16x16xf32>
    %31 = arith.addf %25, %20 : vector<16x16xf32>
    %32 = arith.addf %31, %20 : vector<16x16xf32>
    %33 = arith.addf %32, %30 : vector<16x16xf32>
    %34 = arith.subf %30, %25 : vector<16x16xf32>
    %c1_i32_8 = arith.constant 1 : i32
    %35 = tpu.dynamic_rotate %33 by %c1_i32_8 dim 1 : vector<16x16xf32>, i32 -> vector<16x16xf32>
    %c15_i32_9 = arith.constant 15 : i32
    %36 = tpu.dynamic_rotate %33 by %c15_i32_9 dim 1 : vector<16x16xf32>, i32 -> vector<16x16xf32>
    %c1_i32_10 = arith.constant 1 : i32
    %37 = tpu.dynamic_rotate %34 by %c1_i32_10 dim 1 : vector<16x16xf32>, i32 -> vector<16x16xf32>
    %c15_i32_11 = arith.constant 15 : i32
    %38 = tpu.dynamic_rotate %34 by %c15_i32_11 dim 1 : vector<16x16xf32>, i32 -> vector<16x16xf32>
    %39 = tpu.iota {dimensions = array<i32: 1>} : vector<16x16xi32>
    %c0_i32_12 = arith.constant 0 : i32
    %40 = vector.broadcast %c0_i32_12 : i32 to vector<16x16xi32>
    %41 = arith.cmpi eq, %39, %40 : vector<16x16xi32>
    %c15_i32_13 = arith.constant 15 : i32
    %42 = vector.broadcast %c15_i32_13 : i32 to vector<16x16xi32>
    %43 = arith.cmpi eq, %39, %42 : vector<16x16xi32>
    %cst_14 = arith.constant 0.000000e+00 : f32
    %44 = vector.broadcast %cst_14 : f32 to vector<16x16xf32>
    %45 = arith.select %43, %44, %36 : vector<16x16xi1>, vector<16x16xf32>
    %cst_15 = arith.constant 0.000000e+00 : f32
    %46 = vector.broadcast %cst_15 : f32 to vector<16x16xf32>
    %47 = arith.select %41, %46, %35 : vector<16x16xi1>, vector<16x16xf32>
    %48 = arith.subf %45, %47 : vector<16x16xf32>
    %cst_16 = arith.constant 0.000000e+00 : f32
    %49 = vector.broadcast %cst_16 : f32 to vector<16x16xf32>
    %50 = arith.select %41, %49, %37 : vector<16x16xi1>, vector<16x16xf32>
    %51 = arith.addf %50, %34 : vector<16x16xf32>
    %52 = arith.addf %51, %34 : vector<16x16xf32>
    %cst_17 = arith.constant 0.000000e+00 : f32
    %53 = vector.broadcast %cst_17 : f32 to vector<16x16xf32>
    %54 = arith.select %43, %53, %38 : vector<16x16xi1>, vector<16x16xf32>
    %55 = arith.addf %52, %54 : vector<16x16xf32>
    %56 = arith.mulf %48, %48 : vector<16x16xf32>
    %57 = arith.mulf %55, %55 : vector<16x16xf32>
    %58 = arith.addf %56, %57 : vector<16x16xf32>
    %59 = math.sqrt %58 : vector<16x16xf32>
    %c0_18 = arith.constant 0 : index
    %c0_19 = arith.constant 0 : index
    %c0_20 = arith.constant 0 : index
    %c0_21 = arith.constant 0 : index
    %60 = vector.load %arg2[%c0_18, %c0_19, %c0_20, %c0_21] : memref<1x1x16x16xf32, #tpu.memory_space<vmem>>, vector<1x1x16x16xf32>
    %61 = vector.shape_cast %60 : vector<1x1x16x16xf32> to vector<16x16xf32>
    %62 = vector.shape_cast %59 : vector<16x16xf32> to vector<1x1x16x16xf32>
    tpu.vector_store %arg2[%c0_18, %c0_19, %c0_20, %c0_21], %62 {strides = array<i32>} : memref<1x1x16x16xf32, #tpu.memory_space<vmem>>, vector<1x1x16x16xf32>,
    return
  }
  func.func @transform_0(%arg0: i32) -> (i32, i32, i32, i32) {
    %c0_i32 = arith.constant 0 : i32
    %c0_i32_0 = arith.constant 0 : i32
    %c0_i32_1 = arith.constant 0 : i32
    %c0_i32_2 = arith.constant 0 : i32
    return %arg0, %c0_i32, %c0_i32_0, %c0_i32_1 : i32, i32, i32, i32
  }
  func.func @transform_1(%arg0: i32) -> (i32, i32, i32, i32) {
    %c0_i32 = arith.constant 0 : i32
    %c0_i32_0 = arith.constant 0 : i32
    %c0_i32_1 = arith.constant 0 : i32
    %c0_i32_2 = arith.constant 0 : i32
    return %arg0, %c0_i32, %c0_i32_0, %c0_i32_1 : i32, i32, i32, i32
  }
}

</mosaic_0001>

<llo_original>
// kernel: tpu_custom_call.1
$region0: #{tpu_custom_call.1}
  #allocation0 [shape = 'u32[]', space=smem, size = 0x4, offset = 0x4, fixed_abs, tag = 'smem constant byte address 0x4 - core index']
  #allocation1 [shape = 'u32[72,128]{1,0:T(1,128)}', space=vmem, size = 0x9000, scoped, tag = 'internal scratch']
  %s0 = inlined_call_operand.hbm [shape: f32[2,4,16,16], index: 0, kind: input, shape index: {}]
  %s1 = inlined_call_operand.hbm [shape: f32[2,1,16,16], index: 1, kind: output, shape index: {}]
  %s2 = sld [smem:[#allocation0]]
  $region41: #{tpu_custom_call.1} parent=0
    _
  %s4 = ssub.s32 1, %s2
  %s5 = scalar_select 0, %s4, %s2
  $region1: #{tpu_custom_call.1} parent=0
    #allocation2 [shape = 'u8[49152]{0}', space=vmem, size = 0xc000, scoped, tag = 'input window, operand 0']
    #allocation3 [shape = 's32[2]{0}', space=sflag, size = 0x8, scoped, tag = 'scoped memory for tpu_custom_call.1']
    #allocation4 [shape = 's32[2]{0}', space=sflag, size = 0x8, scoped, tag = 'scoped memory for tpu_custom_call.1']
    #allocation5 [shape = 'u8[16384]{0}', space=vmem, size = 0x4000, scoped, tag = 'output window, operand 0']
    %6 = vsyncpa [#allocation3], 0
    %s7 = scalar_lea.sflag [#allocation3], 1
    %8 = vsyncpa %s7, 0
    %9 = vsyncpa [#allocation4], 0
    %s10 = scalar_lea.sflag [#allocation4], 1
    %11 = vsyncpa %s10, 0
    loop: start=0, step=1, limit=4
    $region2: #{tpu_custom_call.1} parent=1 // loop_pre_header
      _
    $region3: #{tpu_custom_call.1} parent=1 // loop_header
      %s13 = sphi 0, %s17
      %p14 = scmp.ge.s32.totalorder %s13, 4
      %s23 = sphi 0, %s25
      %s26 = sphi 0, %s23
      %s27 = sphi 0, %s26
      %s43 = sphi 0, %s27
      %s49 = sphi 0, %s51
      %s52 = sphi 0, %s49
      %s53 = sphi 0, %s52
      %s69 = sphi 0, %s53
    $region4: #{tpu_custom_call.1} parent=1 // loop_header_branch
      %16 = sbr.rel (%p14) target = $region8
    $region5: #{tpu_custom_call.1} parent=1 // loop_body
      %s18 = ssub.s32 %s13, 1
      %s19 = ssub.s32 %s13, 2
      %s20 = sadd.s32 %s13, 1
      %s21 = ssub.s32 %s13, %s20
      %p22 = scmp.eq.s32.totalorder %s21, 0
      %s24 = sadd.s32 %s23, 1
      %s25 = scalar_select %p22, %s23, %s24
      %p28 = pneg %p22
      %p29 = scmp.eq.s32.totalorder %s13, 1
      %p30 = por %p28, %p29
      %p31 = scmp.ne.s32.totalorder %s23, %s26
      %p32 = scmp.eq.s32.totalorder %s13, 0
      %p33 = por %p31, %p32
      %p34 = scmp.ne.s32.totalorder %s23, %s26
      %p35 = scmp.eq.s32.totalorder %s18, 1
      %p36 = por %p34, %p35
      %p37 = scmp.ne.s32.totalorder %s26, %s27
      %p38 = scmp.eq.s32.totalorder %s18, 0
      %p39 = por %p37, %p38
      %p40 = scmp.ne.s32.totalorder %s26, %s27
      %p41 = scmp.eq.s32.totalorder %s19, 1
      %p42 = por %p40, %p41
      %p44 = scmp.ne.s32.totalorder %s27, %s43
      %p45 = scmp.eq.s32.totalorder %s19, 0
      %p46 = por %p44, %p45
      %s47 = ssub.s32 %s13, %s20
      %p48 = scmp.eq.s32.totalorder %s47, 0
      %s50 = sadd.s32 %s49, 1
      %s51 = scalar_select %p48, %s49, %s50
      %p54 = pneg %p48
      %p55 = scmp.eq.s32.totalorder %s13, 1
      %p56 = por %p54, %p55
      %p57 = scmp.ne.s32.totalorder %s49, %s52
      %p58 = scmp.eq.s32.totalorder %s13, 0
      %p59 = por %p57, %p58
      %p60 = scmp.ne.s32.totalorder %s49, %s52
      %p61 = scmp.eq.s32.totalorder %s18, 1
      %p62 = por %p60, %p61
      %p63 = scmp.ne.s32.totalorder %s52, %s53
      %p64 = scmp.eq.s32.totalorder %s18, 0
      %p65 = por %p63, %p64
      %p66 = scmp.ne.s32.totalorder %s52, %s53
      %p67 = scmp.eq.s32.totalorder %s19, 1
      %p68 = por %p66, %p67
      %p70 = scmp.ne.s32.totalorder %s53, %s69
      %p71 = scmp.eq.s32.totalorder %s19, 0
      %p72 = por %p70, %p71
      %p73 = scmp.le.s32.totalorder 1, %s13
      %p74 = scmp.lt.s32.totalorder %s13, 3
      %p75 = pnand %p73, %p74
      %p76 = pneg %p75
      // Predicated region
      $region9: #{tpu_custom_call.1} parent=5 // pred_check
        _
      $region10: #{tpu_custom_call.1} parent=5 // pred_check_branch
        %78 = sbr.rel (%p75) target = $region12
      $region11: #{tpu_custom_call.1} parent=5 // pred_region
        %s79 = ssub.s32 %s13, 1
      $region12: #{tpu_custom_call.1} parent=5 // pred_fallthru
        _
      %p80 = scmp.lt.s32.totalorder %s13, 2
      // Predicated region
      $region13: #{tpu_custom_call.1} parent=5 // pred_check
        %p81 = pneg %p80
      $region14: #{tpu_custom_call.1} parent=5 // pred_check_branch
        %83 = sbr.rel (%p81) target = $region16
      $region15: #{tpu_custom_call.1} parent=5 // pred_region
        // Predicated region
        $region17: #{tpu_custom_call.1} parent=15 // pred_check
          %p84 = pneg %p33
        $region18: #{tpu_custom_call.1} parent=15 // pred_check_branch
          %86 = sbr.rel (%p84) target = $region20
        $region19: #{tpu_custom_call.1} parent=15 // pred_region
          %s87 = sand.u32 %s23, 1
          %s88 = scalar_lea.sflag [#allocation3], %s87
          %s89 = sand.u32 %s23, 1
          %s90 = smul.addr %s89, 48
          %s91 = scalar_lea.vmem [#allocation2], %s90
          %93 = vsyncadd %s88, 0
          %s94 = smul.addr %s13, 8
          %s95 = smul.addr %s94, 8
          %s96 = scalar_lea.hbm %s0, %s95
          %s97 = sshll.u32 %s96, 4
          %s98 = int_to_ptr.hbm [resolvable:$true] %s97
          %s99 = sshll.u32 %s91, 4
          %s100 = int_to_ptr.vmem [resolvable:$true] %s99
          %105 = dma.hbm_to_vmem [thread:$0]  %s98, 768, %s100, %s88, 128, 128, 8
        $region20: #{tpu_custom_call.1} parent=15 // pred_fallthru
          _
      $region16: #{tpu_custom_call.1} parent=5 // pred_fallthru
        _
      %p106 = scmp.le.s32.totalorder 1, %s13
      %p107 = scmp.lt.s32.totalorder %s13, 3
      %p108 = pnand %p106, %p107
      %p109 = pneg %p108
      // Predicated region
      $region21: #{tpu_custom_call.1} parent=5 // pred_check
        _
      $region22: #{tpu_custom_call.1} parent=5 // pred_check_branch
        %111 = sbr.rel (%p108) target = $region24
      $region23: #{tpu_custom_call.1} parent=5 // pred_region
        %s112 = ssub.s32 %s13, 1
        %s113 = sand.u32 %s26, 1
        %s114 = scalar_lea.sflag [#allocation3], %s113
        %s115 = sand.u32 %s26, 1
        %s116 = smul.addr %s115, 48
        %s117 = scalar_lea.vmem [#allocation2], %s116
        // Predicated region
        $region25: #{tpu_custom_call.1} parent=23 // pred_check
          %p118 = pneg %p39
        $region26: #{tpu_custom_call.1} parent=23 // pred_check_branch
          %120 = sbr.rel (%p118) target = $region28
        $region27: #{tpu_custom_call.1} parent=23 // pred_region
          %122 = dma.done %s114, 768
        $region28: #{tpu_custom_call.1} parent=23 // pred_fallthru
          _
        %s123 = sand.u32 %s26, 1
        %s124 = scalar_lea.sflag [#allocation3], %s123
        %s125 = sand.u32 %s26, 1
        %s126 = smul.addr %s125, 48
        %s127 = scalar_lea.vmem [#allocation2], %s126
        %p128 = pneg %p39
        %p129 = pneg %p36
        %p130 = pneg %p65
        %p131 = pneg %p62
        %s132 = sand.u32 %s52, 1
        %s133 = scalar_lea.sflag [#allocation4], %s132
        %s134 = sand.u32 %s52, 1
        %s135 = smul.addr %s134, 16
        %s136 = scalar_lea.vmem [#allocation5], %s135
        %v137 = vlaneseq
        %v138 = vshrl.u32 %v137, 7
        %v139 = vadd.s32 %v138, 8
        %vm140 = vcmp.eq.s32.totalorder %v138, 0
        %vm141 = vcmp.eq.s32.totalorder %v139, 0
        %vm142 = vcmp.eq.s32.totalorder %v138, 15
        %vm143 = vcmp.eq.s32.totalorder %v139, 15
        %v144 = vld [vmem:[%s117] sm:$0xff]
        %v145 = vld [vmem:[%s117 + $0x8] sm:$0xff]
        %v146 = vld [vmem:[%s117 + $0x10] sm:$0xff]
        %v147 = vld [vmem:[%s117 + $0x18] sm:$0xff]
        %v148 = vld [vmem:[%s117 + $0x20] sm:$0xff]
        %v149 = vld [vmem:[%s117 + $0x28] sm:$0xff]
        %v150 = vmul.f32 %v144, 0.299
        %v151 = vmul.f32 %v145, 0.299
        %v152 = vmul.f32 %v146, 0.587
        %v153 = vmul.f32 %v147, 0.587
        %v154 = vadd.f32 %v150, %v152
        %v155 = vadd.f32 %v151, %v153
        %v156 = vmul.f32 %v148, 0.114
        %v157 = vmul.f32 %v149, 0.114
        %v158 = vadd.f32 %v154, %v156
        %v159 = vadd.f32 %v155, %v157
        %v160 = vrot.slane %v158, 7
        %v161 = vrot.slane %v159, 7
        %vm162 = vcmp.lt.s32.totalorder %v138, 1
        %v163 = vsel %vm162, %v160, %v161
        %v164 = vsel %vm162, %v161, %v160
        %v165 = vsel %vm140, 1, 0
        %v166 = vsel %vm141, 1, 0
        %vm167 = vcmp.eq.s32.totalorder %v165, 1
        %vm168 = vcmp.eq.s32.totalorder %v166, 1
        %v169 = vsel %vm167, 0.0, %v164
        %v170 = vsel %vm168, 0.0, %v163
        %v171 = vrot.slane %v158, 1
        %v172 = vrot.slane %v159, 1
        %vm173 = vcmp.lt.s32.totalorder %v138, 7
        %v174 = vsel %vm173, %v171, %v172
        %v175 = vsel %vm173, %v172, %v171
        %v176 = vsel %vm142, 1, 0
        %v177 = vsel %vm143, 1, 0
        %vm178 = vcmp.eq.s32.totalorder %v176, 1
        %vm179 = vcmp.eq.s32.totalorder %v177, 1
        %v180 = vsel %vm178, 0.0, %v174
        %v181 = vsel %vm179, 0.0, %v175
        %v182 = vadd.f32 %v169, %v158
        %v183 = vadd.f32 %v170, %v159
        %v184 = vadd.f32 %v182, %v158
        %v185 = vadd.f32 %v183, %v159
        %v186 = vadd.f32 %v184, %v180
        %v187 = vadd.f32 %v185, %v181
        %v188 = vsub.f32 %v180, %v169
        %v189 = vsub.f32 %v181, %v170
        %vm190 = vcmask 1047680
        %191 = vrot.lane.b32.xlu0 %v186, 16
        %v192 = vpop.permute.xlu0 %191
        %v193 = vsel %vm190, %v192, %v186
        %194 = vrot.lane.b32.xlu0 %v187, 16
        %v195 = vpop.permute.xlu0 %194
        %v196 = vsel %vm190, %v195, %v187
        %197 = vrot.lane.b32.xlu0 %v193, 16
        %v198 = vpop.permute.xlu0 %197
        %199 = vrot.lane.b32.xlu0 %v196, 16
        %v200 = vpop.permute.xlu0 %199
        %v201 = vsel %vm190, %v198, %v186
        %v202 = vsel %vm190, %v200, %v187
        %203 = vrot.lane.b32.xlu0 %v188, 16
        %v204 = vpop.permute.xlu0 %203
        %v205 = vsel %vm190, %v204, %v188
        %206 = vrot.lane.b32.xlu0 %v189, 16
        %v207 = vpop.permute.xlu0 %206
        %v208 = vsel %vm190, %v207, %v189
        %209 = vrot.lane.b32.xlu0 %v205, 16
        %v210 = vpop.permute.xlu0 %209
        %211 = vrot.lane.b32.xlu0 %v208, 16
        %v212 = vpop.permute.xlu0 %211
        %v213 = vsel %vm190, %v210, %v188
        %v214 = vsel %vm190, %v212, %v189
        %v215 = vlaneseq
        %v216 = vand.u32 %v215, 127
        %vm217 = vcmp.eq.s32.totalorder %v216, 0
        %vm218 = vcmp.eq.s32.totalorder %v216, 15
        %221 = vrot.lane.b32.xlu0 %v201, 127
        %v222 = vpop.permute.xlu0 %221
        %223 = vrot.lane.b32.xlu0 %v202, 127
        %v224 = vpop.permute.xlu0 %223
        %v227 = vsel %vm218, 0.0, %v222
        %v228 = vsel %vm218, 0.0, %v224
        %229 = vrot.lane.b32.xlu0 %v201, 113
        %v230 = vpop.permute.xlu0 %229
        %231 = vrot.lane.b32.xlu0 %v202, 113
        %v232 = vpop.permute.xlu0 %231
        %v235 = vsel %vm217, 0.0, %v230
        %v236 = vsel %vm217, 0.0, %v232
        %v237 = vsub.f32 %v227, %v235
        %v238 = vsub.f32 %v228, %v236
        %241 = vrot.lane.b32.xlu0 %v213, 113
        %v242 = vpop.permute.xlu0 %241
        %243 = vrot.lane.b32.xlu0 %v214, 113
        %v244 = vpop.permute.xlu0 %243
        %v247 = vsel %vm217, 0.0, %v242
        %v248 = vsel %vm217, 0.0, %v244
        %v249 = vadd.f32 %v247, %v188
        %v250 = vadd.f32 %v248, %v189
        %v251 = vadd.f32 %v249, %v188
        %v252 = vadd.f32 %v250, %v189
        %253 = vrot.lane.b32.xlu0 %v213, 127
        %v254 = vpop.permute.xlu0 %253
        %255 = vrot.lane.b32.xlu0 %v214, 127
        %v256 = vpop.permute.xlu0 %255
        %v259 = vsel %vm218, 0.0, %v254
        %v260 = vsel %vm218, 0.0, %v256
        %v261 = vadd.f32 %v251, %v259
        %v262 = vadd.f32 %v252, %v260
        %v263 = vmul.f32 %v237, %v237
        %v264 = vmul.f32 %v238, %v238
        %v265 = vmul.f32 %v261, %v261
        %v266 = vmul.f32 %v262, %v262
        %v267 = vadd.f32 %v263, %v265
        %v268 = vadd.f32 %v264, %v266
        %v269 = vrsqrt.pop %v267
        %v270 = vmul.f32 %v269, %v267
        %v271 = vmul.f32 %v270, %v269
        %v272 = vmul.f32 0.5, %v271
        %v273 = vsub.f32 1.5, %v272
        %v274 = vmul.f32 %v269, %v273
        %v275 = vmul.f32 %v267, %v274
        %vm276 = vcmp.eq.f32.partialorder %v267, inf
        %v277 = vsel %vm276, %v267, %v275
        %vm278 = vcmp.eq.f32.partialorder %v267, 0.0
        %v279 = vand.u32 %v267, 2147483648
        %v280 = vsel %vm278, %v279, %v277
        %v281 = vrsqrt.pop %v268
        %v282 = vmul.f32 %v281, %v268
        %v283 = vmul.f32 %v282, %v281
        %v284 = vmul.f32 0.5, %v283
        %v285 = vsub.f32 1.5, %v284
        %v286 = vmul.f32 %v281, %v285
        %v287 = vmul.f32 %v268, %v286
        %vm288 = vcmp.eq.f32.partialorder %v268, inf
        %v289 = vsel %vm288, %v268, %v287
        %vm290 = vcmp.eq.f32.partialorder %v268, 0.0
        %v291 = vand.u32 %v268, 2147483648
        %v292 = vsel %vm290, %v291, %v289
        %vm293 = vcmask 130048
        %294 = vst.msk [vmem:[%s136] sm:$0xff] %vm293, %v280
        %295 = vst.msk [vmem:[%s136 + $0x8] sm:$0xff] %vm293, %v292
        %s296 = sand.u32 %s52, 1
        %s297 = scalar_lea.sflag [#allocation4], %s296
        %s298 = sand.u32 %s52, 1
        %s299 = smul.addr %s298, 16
        %s300 = scalar_lea.vmem [#allocation5], %s299
        // Predicated region
        $region29: #{tpu_custom_call.1} parent=23 // pred_check
          %p301 = pneg %p62
        $region30: #{tpu_custom_call.1} parent=23 // pred_check_branch
          %303 = sbr.rel (%p301) target = $region32
        $region31: #{tpu_custom_call.1} parent=23 // pred_region
          %305 = vsyncadd %s297, 0
          %s306 = smul.addr %s18, 2
          %s307 = smul.addr %s306, 8
          %s308 = scalar_lea.hbm %s1, %s307
          %s309 = sshll.u32 %s300, 4
          %s310 = int_to_ptr.vmem [resolvable:$true] %s309
          %s311 = sshll.u32 %s308, 4
          %s312 = int_to_ptr.hbm [resolvable:$true] %s311
          %317 = dma.vmem_to_hbm [thread:$0]  %s310, 256, %s312, %s297, 128, 128, 8
        $region32: #{tpu_custom_call.1} parent=23 // pred_fallthru
          _
      $region24: #{tpu_custom_call.1} parent=5 // pred_fallthru
        _
      %p318 = scmp.le.s32.totalorder 2, %s13
      // Predicated region
      $region33: #{tpu_custom_call.1} parent=5 // pred_check
        %p319 = pneg %p318
      $region34: #{tpu_custom_call.1} parent=5 // pred_check_branch
        %321 = sbr.rel (%p319) target = $region36
      $region35: #{tpu_custom_call.1} parent=5 // pred_region
        %s322 = ssub.s32 %s13, 2
        // Predicated region
        $region37: #{tpu_custom_call.1} parent=35 // pred_check
          %p323 = pneg %p68
        $region38: #{tpu_custom_call.1} parent=35 // pred_check_branch
          %325 = sbr.rel (%p323) target = $region40
        $region39: #{tpu_custom_call.1} parent=35 // pred_region
          %s326 = sand.u32 %s53, 1
          %s327 = scalar_lea.sflag [#allocation4], %s326
          %s328 = sand.u32 %s53, 1
          %s329 = smul.addr %s328, 16
          %s330 = scalar_lea.vmem [#allocation5], %s329
          %332 = dma.done %s327, 256
        $region40: #{tpu_custom_call.1} parent=35 // pred_fallthru
          _
      $region36: #{tpu_custom_call.1} parent=5 // pred_fallthru
        _
    $region6: #{tpu_custom_call.1} parent=1 // loop_footer
      %s17 = sadd.s32 1, %s13
    $region7: #{tpu_custom_call.1} parent=1 // loop_footer_branch
      %12 = sbr.rel target = $region3
    $region8: #{tpu_custom_call.1} parent=1 // loop_exit
      _
    %333 = vsyncpa [#allocation3], 1
    %s334 = scalar_lea.sflag [#allocation3], 1
    %335 = vsyncpa %s334, 1
    %336 = vsyncpa [#allocation4], 1
    %s337 = scalar_lea.sflag [#allocation4], 1
    %338 = vsyncpa %s337, 1

</llo_original>
